<compile_context>
chip_gen: v6e
topology: v6e:2x2x1
jax: 0.10.0
libtpu: 0.0.40
codegen_flags: <defaults>
</compile_context>

<pallas_src>
import functools

import jax
import jax.numpy as jnp
from jax.experimental import pallas as pl
from jax.experimental.pallas import tpu as pltpu


def _mlp_kernel(*refs, activation, use_bias):
    if use_bias:
        x_ref, w_ref, b_ref, o_ref, acc_ref = refs
    else:
        x_ref, w_ref, o_ref, acc_ref = refs
        b_ref = None

    k = pl.program_id(2)

    @pl.when(k == 0)
    def _init():
        acc_ref[...] = jnp.zeros_like(acc_ref)

    # x_ref: (tm, tk); w_ref: (tn, tk). Contract the shared K axis, i.e.
    # x @ W.T, without ever materializing a transposed weight in HBM.
    acc_ref[...] += jax.lax.dot_general(
        x_ref[...], w_ref[...],
        dimension_numbers=(((1,), (1,)), ((), ())),
        preferred_element_type=jnp.float32)

    @pl.when(k == pl.num_programs(2) - 1)
    def _finalize():
        acc = acc_ref[...]
        if use_bias:
            acc = acc + b_ref[...]      # (1, tn) broadcasts over rows
        acc = activation(acc)           # fused elementwise activation in f32
        o_ref[...] = acc.astype(o_ref.dtype)


def _pick_tk(K, preferred=512):
    """Largest clean K tile; falls back to full K so reduction padding
    (which would corrupt the accumulation) never occurs."""
    if K <= preferred:
        return K
    for cand in (preferred, 256, 128):
        if K % cand == 0:
            return cand
    return K


def mlp_forward(x, weight, bias=None, activation=None, *,
                tm=None, tn=None, tk=None):
    """Pallas equivalent of MLP.forward: activation(x @ weight.T + bias).

    x:      [M, in_feature]
    weight: [out_feature, in_feature]   (PyTorch nn.Linear convention, NOT transposed)
    bias:   [out_feature] or None
    """
    if activation is None:
        activation = lambda v: v
    assert callable(activation)

    M, K = x.shape
    N, K2 = weight.shape
    assert K == K2, "in_feature mismatch"
    use_bias = bias is not None

    # Tile defaults: 128-multiple (v5e MXU) / lane-dense output (tn >= 512
    # when N allows). Full-extent blocks for small dims keep (8,128) legal.
    tm = min(M, 256) if tm is None else min(tm, M)
    tn = min(N, 512) if tn is None else min(tn, N)
    tk = _pick_tk(K) if tk is None else tk
    if K % tk != 0:           # never allow a padded partial K tile
        tk = K

    grid = (pl.cdiv(M, tm), pl.cdiv(N, tn), K // tk)

    in_specs = [
        pl.BlockSpec((tm, tk), lambda i, j, k: (i, k)),    # x row/K tile
        pl.BlockSpec((tn, tk), lambda i, j, k: (j, k)),    # weight [N,K] tile
    ]
    args = [x, weight]
    if use_bias:
        in_specs.append(pl.BlockSpec((1, tn), lambda i, j, k: (0, j)))
        args.append(bias.reshape(1, N))

    kernel = functools.partial(_mlp_kernel, activation=activation,
                               use_bias=use_bias)

    itemsize = jnp.dtype(x.dtype).itemsize
    bytes_accessed = (x.size * jnp.dtype(x.dtype).itemsize
                      + weight.size * jnp.dtype(weight.dtype).itemsize
                      + (bias.size * jnp.dtype(bias.dtype).itemsize if use_bias else 0)
                      + M * N * itemsize)
    cost = pl.CostEstimate(flops=2 * M * N * K, transcendentals=0,
                           bytes_accessed=bytes_accessed)

    return pl.pallas_call(
        kernel,
        out_shape=jax.ShapeDtypeStruct((M, N), x.dtype),
        grid_spec=pltpu.PrefetchScalarGridSpec(
            num_scalar_prefetch=0,
            grid=grid,
            in_specs=in_specs,
            out_specs=pl.BlockSpec((tm, tn), lambda i, j, k: (i, j)),
            scratch_shapes=[pltpu.VMEM((tm, tn), jnp.float32)],
        ),
        compiler_params=pltpu.CompilerParams(
            dimension_semantics=("parallel", "parallel", "arbitrary"),
            vmem_limit_bytes=48 * 1024 * 1024),
        cost_estimate=cost,
    )(*args)


if __name__ == "__main__":
    key = jax.random.PRNGKey(0)
    k_x, k_w, k_x2, k_w2, k_b2 = jax.random.split(key, 5)

    # Small shapes consistent with the module (batch=8, in=32, out=64).
    batch, in_feature, out_feature = 8, 32, 64
    x = jax.random.normal(k_x, (batch, in_feature), dtype=jnp.float32)
    bound = 1.0 / (in_feature ** 0.5)
    weight = jax.random.uniform(k_w, (out_feature, in_feature),
                                minval=-bound, maxval=bound, dtype=jnp.float32)
    bias = jnp.zeros((out_feature,), jnp.float32)   # reset_parameters(): zeros_

    ref = x @ weight.T + bias

    # Default module config: activation=None -> identity, bias=True.
    out = jax.block_until_ready(mlp_forward(x, weight, bias, activation=None))
    assert jnp.allclose(out, ref, atol=1e-4, rtol=1e-4)

    # Fused non-trivial activation.
    out_relu = jax.block_until_ready(
        mlp_forward(x, weight, bias, activation=jax.nn.relu))
    assert jnp.allclose(out_relu, jnp.maximum(ref, 0.0), atol=1e-4, rtol=1e-4)

    # bias=False path: bias operand omitted entirely (no zero-bias DMA).
    out_nb = jax.block_until_ready(mlp_forward(x, weight, None, activation=None))
    assert jnp.allclose(out_nb, x @ weight.T, atol=1e-4, rtol=1e-4)

    # Medium shape exercising M/N/K tiling, accumulator init/finalize and
    # the software pipeline.
    M2, K2, N2 = 256, 1024, 512
    x2 = jax.random.normal(k_x2, (M2, K2), dtype=jnp.float32)
    w2 = jax.random.normal(k_w2, (N2, K2), dtype=jnp.float32) * (1.0 / K2 ** 0.5)
    b2 = jax.random.normal(k_b2, (N2,), dtype=jnp.float32)
    out2 = jax.block_until_ready(
        mlp_forward(x2, w2, b2, activation=jax.nn.gelu))
    ref2 = jax.nn.gelu(
        jax.lax.dot_general(x2, w2, (((1,), (1,)), ((), ())),
                            preferred_element_type=jnp.float32) + b2)
    assert jnp.allclose(out2, ref2, atol=5e-3, rtol=5e-3)

    print("KERNEL_OK")
</pallas_src>

<mosaic_0001>
module attributes {stable_mosaic.version = 11 : i64} {
  func.func @_mlp_kernel(%arg0: i32, %arg1: i32, %arg2: i32, %arg3: memref<8x32xf32, #tpu.memory_space<vmem>>, %arg4: memref<64x32xf32, #tpu.memory_space<vmem>>, %arg5: memref<1x64xf32, #tpu.memory_space<vmem>>, %arg6: memref<8x64xf32, #tpu.memory_space<vmem>>, %arg7: memref<8x64xf32, #tpu.memory_space<vmem>>) attributes {dimension_semantics = [#tpu.dimension_semantics<parallel>, #tpu.dimension_semantics<parallel>, #tpu.dimension_semantics<arbitrary>], iteration_bounds = array<i64: 1, 1, 1>, scalar_prefetch = 0 : i64, scratch_operands = 1 : i64, tpu.core_type = #tpu.core_type<tc>, window_params = [{transform_indices = @transform_0, window_bounds = array<i64: 8, 32>}, {transform_indices = @transform_1, window_bounds = array<i64: 64, 32>}, {transform_indices = @transform_2, window_bounds = array<i64: 1, 64>}, {transform_indices = @transform_3, window_bounds = array<i64: 8, 64>}]} {
    %c0_i32 = arith.constant 0 : i32
    %0 = arith.cmpi eq, %arg2, %c0_i32 : i32
    %1 = arith.extui %0 : i1 to i32
    %c0_i32_0 = arith.constant 0 : i32
    %2 = arith.cmpi ne, %1, %c0_i32_0 : i32
    scf.if %2 {
      %cst_10 = arith.constant 0.000000e+00 : f32
      %12 = vector.broadcast %cst_10 : f32 to vector<8x64xf32>
      %c0_11 = arith.constant 0 : index
      %c0_12 = arith.constant 0 : index
      %13 = vector.load %arg7[%c0_11, %c0_12] : memref<8x64xf32, #tpu.memory_space<vmem>>, vector<8x64xf32>
      tpu.vector_store %arg7[%c0_11, %c0_12], %12 {strides = array<i32>} : memref<8x64xf32, #tpu.memory_space<vmem>>, vector<8x64xf32>,
    } else {
    }
    %c0 = arith.constant 0 : index
    %c0_1 = arith.constant 0 : index
    %3 = vector.load %arg7[%c0, %c0_1] : memref<8x64xf32, #tpu.memory_space<vmem>>, vector<8x64xf32>
    %c0_2 = arith.constant 0 : index
    %c0_3 = arith.constant 0 : index
    %4 = vector.load %arg3[%c0_2, %c0_3] : memref<8x32xf32, #tpu.memory_space<vmem>>, vector<8x32xf32>
    %c0_4 = arith.constant 0 : index
    %c0_5 = arith.constant 0 : index
    %5 = vector.load %arg4[%c0_4, %c0_5] : memref<64x32xf32, #tpu.memory_space<vmem>>, vector<64x32xf32>
    %cst = arith.constant dense<0.000000e+00> : vector<8x64xf32>
    %6 = tpu.matmul %4, %5, %cst {dimension_numbers = #tpu.dot_dimension_numbers<[1], [1], [0], [0], [0, 0, 1, 0], [], []>} : vector<8x32xf32>, vector<64x32xf32>, vector<8x64xf32> -> vector<8x64xf32>
    %7 = arith.addf %3, %6 : vector<8x64xf32>
    %c0_6 = arith.constant 0 : index
    %c0_7 = arith.constant 0 : index
    %8 = vector.load %arg7[%c0_6, %c0_7] : memref<8x64xf32, #tpu.memory_space<vmem>>, vector<8x64xf32>
    tpu.vector_store %arg7[%c0_6, %c0_7], %7 {strides = array<i32>} : memref<8x64xf32, #tpu.memory_space<vmem>>, vector<8x64xf32>,
    %c0_i32_8 = arith.constant 0 : i32
    %9 = arith.cmpi eq, %arg2, %c0_i32_8 : i32
    %10 = arith.extui %9 : i1 to i32
    %c0_i32_9 = arith.constant 0 : i32
    %11 = arith.cmpi ne, %10, %c0_i32_9 : i32
    scf.if %11 {
      %c0_10 = arith.constant 0 : index
      %c0_11 = arith.constant 0 : index
      %12 = vector.load %arg7[%c0_10, %c0_11] : memref<8x64xf32, #tpu.memory_space<vmem>>, vector<8x64xf32>
      %c0_12 = arith.constant 0 : index
      %c0_13 = arith.constant 0 : index
      %13 = vector.load %arg5[%c0_12, %c0_13] : memref<1x64xf32, #tpu.memory_space<vmem>>, vector<1x64xf32>
      %14 = vector.broadcast %13 : vector<1x64xf32> to vector<8x64xf32>
      %15 = arith.addf %12, %14 : vector<8x64xf32>
      %c0_14 = arith.constant 0 : index
      %c0_15 = arith.constant 0 : index
      %16 = vector.load %arg6[%c0_14, %c0_15] : memref<8x64xf32, #tpu.memory_space<vmem>>, vector<8x64xf32>
      tpu.vector_store %arg6[%c0_14, %c0_15], %15 {strides = array<i32>} : memref<8x64xf32, #tpu.memory_space<vmem>>, vector<8x64xf32>,
    } else {
    }
    return
  }
  func.func @transform_0(%arg0: i32, %arg1: i32, %arg2: i32) -> (i32, i32) {
    %c0_i32 = arith.constant 0 : i32
    return %arg0, %arg2 : i32, i32
  }
  func.func @transform_1(%arg0: i32, %arg1: i32, %arg2: i32) -> (i32, i32) {
    %c0_i32 = arith.constant 0 : i32
    return %arg1, %arg2 : i32, i32
  }
  func.func @transform_2(%arg0: i32, %arg1: i32, %arg2: i32) -> (i32, i32) {
    %c0_i32 = arith.constant 0 : i32
    %c0_i32_0 = arith.constant 0 : i32
    return %c0_i32, %arg1 : i32, i32
  }
  func.func @transform_3(%arg0: i32, %arg1: i32, %arg2: i32) -> (i32, i32) {
    %c0_i32 = arith.constant 0 : i32
    return %arg0, %arg1 : i32, i32
  }
}

</mosaic_0001>

<llo_original>
// kernel: tpu_custom_call.1
$region0: #{tpu_custom_call.1}
  #allocation0 [shape = 'u32[]', space=smem, size = 0x4, offset = 0x4, fixed_abs, tag = 'smem constant byte address 0x4 - core index']
  #allocation1 [shape = 'u32[144,128]{1,0:T(1,128)}', space=vmem, size = 0x12000, scoped, tag = 'internal scratch']
  #allocation2 [shape = 'f32[8,64]{1,0:T(8,128)}', space=vmem, size = 0x1000, scoped, tag = 'scratch operand']
  %s0 = inlined_call_operand.vmem [shape: f32[8,32], index: 0, kind: input, shape index: {}]
  %s1 = inlined_call_operand.vmem [shape: f32[64,32], index: 1, kind: input, shape index: {}]
  %s2 = inlined_call_operand.vmem [shape: f32[1,64], index: 2, kind: input, shape index: {}]
  %s3 = inlined_call_operand.hbm [shape: f32[8,64], index: 3, kind: output, shape index: {}]
  %s4 = sld [smem:[#allocation0]]
  $region30: #{tpu_custom_call.1} parent=0
    _
  %s6 = ssub.s32 1, %s4
  %s7 = scalar_select 0, %s6, %s4
  $region1: #{tpu_custom_call.1} parent=0
    #allocation3 [shape = 'u8[4096]{0}', space=vmem, size = 0x1000, scoped, tag = 'output window, operand 0, single buffered']
    #allocation4 [shape = 's32[1]{0}', space=sflag, size = 0x4, scoped, tag = 'scoped memory for tpu_custom_call.1']
    %8 = vsyncpa [#allocation4], 0
    // Predicated region
    $region2: #{tpu_custom_call.1} parent=1 // pred_check
      _
    $region3: #{tpu_custom_call.1} parent=1 // pred_check_branch
      %10 = sbr.rel (0) target = $region5
    $region4: #{tpu_custom_call.1} parent=1 // pred_region
      _
    $region5: #{tpu_custom_call.1} parent=1 // pred_fallthru
      _
    // Predicated region
    $region6: #{tpu_custom_call.1} parent=1 // pred_check
      _
    $region7: #{tpu_custom_call.1} parent=1 // pred_check_branch
      %12 = sbr.rel (0) target = $region9
    $region8: #{tpu_custom_call.1} parent=1 // pred_region
      _
    $region9: #{tpu_custom_call.1} parent=1 // pred_fallthru
      _
    // Predicated region
    $region10: #{tpu_custom_call.1} parent=1 // pred_check
      _
    $region11: #{tpu_custom_call.1} parent=1 // pred_check_branch
      %14 = sbr.rel (0) target = $region13
    $region12: #{tpu_custom_call.1} parent=1 // pred_region
      _
    $region13: #{tpu_custom_call.1} parent=1 // pred_fallthru
      _
    %p15 = scmp.eq.s32.totalorder 0, 0
    // Predicated region
    $region14: #{tpu_custom_call.1} parent=1 // pred_check
      %p16 = pneg %p15
    $region15: #{tpu_custom_call.1} parent=1 // pred_check_branch
      %18 = sbr.rel (%p16) target = $region17
    $region16: #{tpu_custom_call.1} parent=1 // pred_region
      %vm19 = vcmask 523264
      %20 = vst.msk [vmem:[#allocation2] sm:$0xff] %vm19, 0.0
    $region17: #{tpu_custom_call.1} parent=1 // pred_fallthru
      _
    %v21 = vld [vmem:[#allocation2] sm:$0xff]
    %v22 = vld [vmem:[%s0] sm:$0xff]
    %v23 = vld [vmem:[%s1] sm:$0xff]
    %v24 = vld [vmem:[%s1 + $0x8] sm:$0xff]
    %v25 = vld [vmem:[%s1 + $0x10] sm:$0xff]
    %v26 = vld [vmem:[%s1 + $0x18] sm:$0xff]
    %v27 = vld [vmem:[%s1 + $0x20] sm:$0xff]
    %v28 = vld [vmem:[%s1 + $0x28] sm:$0xff]
    %v29 = vld [vmem:[%s1 + $0x30] sm:$0xff]
    %v30 = vld [vmem:[%s1 + $0x38] sm:$0xff]
    %vm31 = vcmask 261120
    %v33 = vsel %vm31, %v22, 0
    %v36 = vsel %vm31, %v23, 0
    %v39 = vsel %vm31, %v24, 0
    %v42 = vsel %vm31, %v25, 0
    %v45 = vsel %vm31, %v26, 0
    %v48 = vsel %vm31, %v27, 0
    %v51 = vsel %vm31, %v28, 0
    %v54 = vsel %vm31, %v29, 0
    %v57 = vsel %vm31, %v30, 0
    %59 = vmatprep.subr.mxu0 0.0
    %60 = vmatpush1.xpose.msra.mxu0 0.0
    %61 = vmatprep.subr.mxu0 0.0
    %62 = vmatpush1.xpose.msra.mxu0 0.0
    %63 = vmatprep.subr.mxu0 0.0
    %64 = vmatpush1.xpose.msra.mxu0 0.0
    %65 = vmatprep.subr.mxu0 0.0
    %66 = vmatpush1.xpose.msra.mxu0 0.0
    %67 = vmatprep.subr.mxu0 0.0
    %68 = vmatpush1.xpose.msra.mxu0 0.0
    %69 = vmatprep.subr.mxu0 0.0
    %70 = vmatpush1.xpose.msra.mxu0 0.0
    %71 = vmatprep.subr.mxu0 0.0
    %72 = vmatpush1.xpose.msra.mxu0 0.0
    %73 = vmatprep.subr.mxu0 0.0
    %74 = vmatpush1.xpose.msra.mxu0 0.0
    %75 = vmatprep.subr.mxu0 0.0
    %76 = vmatpush1.xpose.msra.mxu0 %v57
    %77 = vmatprep.subr.mxu0 0.0
    %78 = vmatpush1.xpose.msra.mxu0 %v54
    %79 = vmatprep.subr.mxu0 0.0
    %80 = vmatpush1.xpose.msra.mxu0 %v51
    %81 = vmatprep.subr.mxu0 0.0
    %82 = vmatpush1.xpose.msra.mxu0 %v48
    %83 = vmatprep.subr.mxu0 0.0
    %84 = vmatpush1.xpose.msra.mxu0 %v45
    %85 = vmatprep.subr.mxu0 0.0
    %86 = vmatpush1.xpose.msra.mxu0 %v42
    %87 = vmatprep.subr.mxu0 0.0
    %88 = vmatpush1.xpose.msra.mxu0 %v39
    %89 = vmatprep.subr.mxu0 0.0
    %90 = vmatpush1.xpose.msra.mxu0 %v36
    %91 = vmatprep.subr.mxu0 0.0
    %92 = vmatpush2.xpose.msra.mxu0 0.0
    %93 = vmatprep.subr.mxu0 0.0
    %94 = vmatpush2.xpose.msra.mxu0 0.0
    %95 = vmatprep.subr.mxu0 0.0
    %96 = vmatpush2.xpose.msra.mxu0 0.0
    %97 = vmatprep.subr.mxu0 0.0
    %98 = vmatpush2.xpose.msra.mxu0 0.0
    %99 = vmatprep.subr.mxu0 0.0
    %100 = vmatpush2.xpose.msra.mxu0 0.0
    %101 = vmatprep.subr.mxu0 0.0
    %102 = vmatpush2.xpose.msra.mxu0 0.0
    %103 = vmatprep.subr.mxu0 0.0
    %104 = vmatpush2.xpose.msra.mxu0 0.0
    %105 = vmatprep.subr.mxu0 0.0
    %106 = vmatpush2.xpose.msra.mxu0 0.0
    %107 = vmatprep.subr.mxu0 0.0
    %108 = vmatpush2.xpose.msra.mxu0 0.0
    %109 = vmatprep.subr.mxu0 0.0
    %110 = vmatpush2.xpose.msra.mxu0 0.0
    %111 = vmatprep.subr.mxu0 0.0
    %112 = vmatpush2.xpose.msra.mxu0 0.0
    %113 = vmatprep.subr.mxu0 0.0
    %114 = vmatpush2.xpose.msra.mxu0 0.0
    %115 = vmatprep.subr.mxu0 0.0
    %116 = vmatpush2.xpose.msra.mxu0 0.0
    %117 = vmatprep.subr.mxu0 0.0
    %118 = vmatpush2.xpose.msra.mxu0 0.0
    %119 = vmatprep.subr.mxu0 0.0
    %120 = vmatpush2.xpose.msra.mxu0 0.0
    %121 = vmatprep.subr.mxu0 0.0
    %122 = vmatpush2.xpose.msra.mxu0 0.0
    %123 = vmatprep.mubr.f32.mxu0 0.0
    %124 = vmatmul.mubr.f32.gmra.mxu0 %v33
    %v125 = vpop.f32.mrf.mxu0
    %v126 = vadd.f32 0.0, %v125
    %v127 = vpop.f32.mrf.mxu0
    %128 = vdwg.mxu0
    %v129 = vadd.f32 %v21, %v126
    %vm130 = vcmask 523264
    %131 = vst.msk [vmem:[#allocation2] sm:$0xff] %vm130, %v129
    // Predicated region
    $region18: #{tpu_custom_call.1} parent=1 // pred_check
      %p132 = pneg %p15
    $region19: #{tpu_custom_call.1} parent=1 // pred_check_branch
      %134 = sbr.rel (%p132) target = $region21
    $region20: #{tpu_custom_call.1} parent=1 // pred_region
      %v135 = vld [vmem:[#allocation2] sm:$0xff]
      %v136 = vld [vmem:[%s2] sm:$0x1]
      %v138 = vlaneseq
      %v139 = vshrl.u32 %v138, 7
      %v140 = vsub.s32 0, %v139
      %v141 = vrot.slane %v136, %v140
      %v143 = vadd.f32 %v135, %v141
      %144 = vst.msk [vmem:[#allocation3] sm:$0xff] %vm130, %v143
    $region21: #{tpu_custom_call.1} parent=1 // pred_fallthru
      _
    // Predicated region
    $region22: #{tpu_custom_call.1} parent=1 // pred_check
      _
    $region23: #{tpu_custom_call.1} parent=1 // pred_check_branch
      %146 = sbr.rel (0) target = $region25
    $region24: #{tpu_custom_call.1} parent=1 // pred_region
      %s148 = ssub.s32 128, 128
      %149 = vsyncadd [#allocation4], %s148
      %s151 = sshll.u32 [#allocation3], 4
      %s152 = int_to_ptr.vmem [resolvable:$true] %s151
      %154 = dma.vmem_to_hbm [thread:$0]  %s152, 128, %s3, [#allocation4]
    $region25: #{tpu_custom_call.1} parent=1 // pred_fallthru
      _
    // Predicated region
    $region26: #{tpu_custom_call.1} parent=1 // pred_check
      _
    $region27: #{tpu_custom_call.1} parent=1 // pred_check_branch
      %156 = sbr.rel (0) target = $region29
    $region28: #{tpu_custom_call.1} parent=1 // pred_region
      %157 = dma.done [#allocation4], 128
    $region29: #{tpu_custom_call.1} parent=1 // pred_fallthru
      _
    %158 = vsyncpa [#allocation4], 1

</llo_original>
